<compile_context>
chip_gen: v6e
topology: v6e:2x2x1
jax: 0.10.0
libtpu: 0.0.40
codegen_flags: <defaults>
</compile_context>

<pallas_src>
import math
import functools

import jax
import jax.numpy as jnp
from jax import lax
from jax.experimental import pallas as pl
from jax.experimental.pallas import tpu as pltpu


def _qkv_attention_kernel(q_ref, k_ref, v_ref, out_ref, *, ch, matmul_dtype):
    """One (batch, head, q-tile) grid step.

    q_ref  : [1, ch, tq]   this head's query tile
    k_ref  : [1, ch, T ]   this head's full keys
    v_ref  : [1, ch, T ]   this head's full values
    out_ref: [1, ch, tq]
    """
    # Reference scales q and k each by ch**-0.25; fold scale**2 into the small
    # [ch, tq] q operand (numerically equivalent in real arithmetic; softmax is
    # max-subtracted so it stays stable).
    logit_scale = 1.0 / math.sqrt(ch)

    q = q_ref[0] * logit_scale            # [ch, tq]
    k = k_ref[0]                          # [ch, T]
    v = v_ref[0]                          # [ch, T]

    if matmul_dtype is not None:          # bf16 MXU path for v6e/v7x
        q = q.astype(matmul_dtype)
        k = k.astype(matmul_dtype)
        v_mm = v.astype(matmul_dtype)
    else:
        v_mm = v

    # Logits in key-major [s, t] orientation:
    #   w[s, t] = sum_c k[c, s] * q[c, t]      (MXU, f32 accumulation)
    w = lax.dot_general(k, q, (((0,), (0,)), ((), ())),
                        preferred_element_type=jnp.float32)      # [T, tq]

    # Max-subtracted, *unnormalized* softmax numerator over the key axis (s).
    w = w - jnp.max(w, axis=0, keepdims=True)
    e = jnp.exp(w)                                               # [T, tq]
    l = jnp.sum(e, axis=0, keepdims=True)                        # [1, tq]

    p_mm = e.astype(matmul_dtype) if matmul_dtype is not None else e

    # a[c, t] = sum_s v[c, s] * e[s, t] -- both operands MXU-native, no [T, T]
    # transpose of the probability matrix.
    a = lax.dot_general(v_mm, p_mm, (((1,), (0,)), ((), ())),
                        preferred_element_type=jnp.float32)      # [ch, tq]

    # Deferred normalization on the small [ch, tq] result (EUP reciprocal of a
    # [1, tq] vector + one VPU multiply, instead of a [T, T] divide).
    inv_l = pl.reciprocal(l, approx=False)   # approx=True OK if tolerance allows
    out_ref[0] = (a * inv_l).astype(out_ref.dtype)


def qkv_attention(qkv, n_heads, *, block_q=128, matmul_dtype=None):
    """qkv: [B, 3*H*ch, T]  ->  [B, H*ch, T]  (same semantics as the module).

    block_q     : query tile (multiple of 128, must divide T).
    matmul_dtype: optional dtype for the MXU operands (e.g. jnp.bfloat16 on
                  v6e/v7x); None keeps everything in the input dtype / f32.
    """
    B, width, T = qkv.shape
    assert width % (3 * n_heads) == 0
    ch = width // (3 * n_heads)
    HC = n_heads * ch

    # Layout guards: head slices must sit on f32 sublane-group boundaries and
    # the lane axis must stay dense for unmasked vst stores.
    # TODO(synk): pad ch to a multiple of 8 / T to a multiple of 128 in the
    # wrapper when the model uses shapes that violate these.
    assert ch % 8 == 0, "head dim must be a multiple of 8 (f32 sublane group)"
    assert T % 128 == 0, "sequence length must be a multiple of 128 (lane axis)"
    block_q = min(block_q, T)
    assert T % block_q == 0 and block_q % 128 == 0

    kernel = functools.partial(_qkv_attention_kernel, ch=ch,
                               matmul_dtype=matmul_dtype)

    grid = (B, n_heads, T // block_q)

    return pl.pallas_call(
        kernel,
        out_shape=jax.ShapeDtypeStruct((B, HC, T), qkv.dtype),
        grid_spec=pltpu.PrefetchScalarGridSpec(
            num_scalar_prefetch=0,
            grid=grid,
            in_specs=[
                # q slab of head h: channels [h*ch, (h+1)*ch) -> block index h.
                pl.BlockSpec((1, ch, block_q), lambda b, h, qi: (b, h, qi)),
                # k slab: offset H*ch -> block index n_heads + h (full T).
                pl.BlockSpec((1, ch, T), lambda b, h, qi: (b, n_heads + h, 0)),
                # v slab: offset 2*H*ch -> block index 2*n_heads + h (full T).
                pl.BlockSpec((1, ch, T), lambda b, h, qi: (b, 2 * n_heads + h, 0)),
            ],
            out_specs=pl.BlockSpec((1, ch, block_q), lambda b, h, qi: (b, h, qi)),
        ),
        compiler_params=pltpu.CompilerParams(
            # Every grid step writes a distinct output block; all axes are
            # independent, so both v7x TensorCores can be fed.
            dimension_semantics=("parallel", "parallel", "parallel"),
        ),
    )(qkv, qkv, qkv)   # same tensor, three per-head views


def qkv_attention_reference(qkv, n_heads):
    """Pure-JAX reference mirroring the PyTorch forward exactly."""
    bs, width, length = qkv.shape
    ch = width // (3 * n_heads)
    q, k, v = jnp.split(qkv, 3, axis=1)
    scale = 1.0 / math.sqrt(math.sqrt(ch))
    q = (q * scale).reshape(bs * n_heads, ch, length)
    k = (k * scale).reshape(bs * n_heads, ch, length)
    v = v.reshape(bs * n_heads, ch, length)
    w = jnp.einsum('bct,bcs->bts', q, k)
    w = jax.nn.softmax(w.astype(jnp.float32), axis=-1).astype(w.dtype)
    a = jnp.einsum('bts,bcs->bct', w, v)
    return a.reshape(bs, -1, length)


if __name__ == "__main__":
    # Small shapes implied by the forward: qkv is [B, 3*H*ch, T].
    B = 2
    n_heads = 4
    ch = 8                     # multiple of 8 -> head slices on sublane groups
    width = 3 * n_heads * ch   # 96
    T = 128                    # lane-dense output stores

    key = jax.random.PRNGKey(0)
    qkv = jax.random.normal(key, (B, width, T), jnp.float32)

    out = qkv_attention(qkv, n_heads)
    out = jax.block_until_ready(out)

    ref = qkv_attention_reference(qkv, n_heads)
    assert out.shape == (B, n_heads * ch, T), out.shape
    max_err = float(jnp.max(jnp.abs(out - ref)))
    assert jnp.allclose(out, ref, atol=1e-4, rtol=1e-4), f"max_err={max_err}"
    print("KERNEL_OK")
</pallas_src>

<mosaic_0001>
module attributes {stable_mosaic.version = 11 : i64} {
  func.func @_qkv_attention_kernel(%arg0: i32, %arg1: i32, %arg2: i32, %arg3: memref<1x8x128xf32, #tpu.memory_space<vmem>>, %arg4: memref<1x8x128xf32, #tpu.memory_space<vmem>>, %arg5: memref<1x8x128xf32, #tpu.memory_space<vmem>>, %arg6: memref<1x8x128xf32, #tpu.memory_space<vmem>>) attributes {dimension_semantics = [#tpu.dimension_semantics<parallel>, #tpu.dimension_semantics<parallel>, #tpu.dimension_semantics<parallel>], iteration_bounds = array<i64: 2, 4, 1>, scalar_prefetch = 0 : i64, scratch_operands = 0 : i64, tpu.core_type = #tpu.core_type<tc>, window_params = [{transform_indices = @transform_0, window_bounds = array<i64: 1, 8, 128>}, {transform_indices = @transform_1, window_bounds = array<i64: 1, 8, 128>}, {transform_indices = @transform_2, window_bounds = array<i64: 1, 8, 128>}, {transform_indices = @transform_3, window_bounds = array<i64: 1, 8, 128>}]} {
    %c0 = arith.constant 0 : index
    %c0_0 = arith.constant 0 : index
    %c0_1 = arith.constant 0 : index
    %0 = vector.load %arg3[%c0, %c0_0, %c0_1] : memref<1x8x128xf32, #tpu.memory_space<vmem>>, vector<1x8x128xf32>
    %1 = vector.shape_cast %0 : vector<1x8x128xf32> to vector<8x128xf32>
    %cst = arith.constant 0.353553385 : f32
    %2 = vector.broadcast %cst : f32 to vector<8x128xf32>
    %3 = arith.mulf %1, %2 : vector<8x128xf32>
    %c0_2 = arith.constant 0 : index
    %c0_3 = arith.constant 0 : index
    %c0_4 = arith.constant 0 : index
    %4 = vector.load %arg4[%c0_2, %c0_3, %c0_4] : memref<1x8x128xf32, #tpu.memory_space<vmem>>, vector<1x8x128xf32>
    %5 = vector.shape_cast %4 : vector<1x8x128xf32> to vector<8x128xf32>
    %c0_5 = arith.constant 0 : index
    %c0_6 = arith.constant 0 : index
    %c0_7 = arith.constant 0 : index
    %6 = vector.load %arg5[%c0_5, %c0_6, %c0_7] : memref<1x8x128xf32, #tpu.memory_space<vmem>>, vector<1x8x128xf32>
    %7 = vector.shape_cast %6 : vector<1x8x128xf32> to vector<8x128xf32>
    %cst_8 = arith.constant dense<0.000000e+00> : vector<128x128xf32>
    %8 = tpu.matmul %5, %3, %cst_8 {dimension_numbers = #tpu.dot_dimension_numbers<[0], [0], [1], [1], [0, 1, 1, 1], [], []>} : vector<8x128xf32>, vector<8x128xf32>, vector<128x128xf32> -> vector<128x128xf32>
    %cst_9 = arith.constant dense<0xFF800000> : vector<128xf32>
    %9 = vector.multi_reduction <maximumf>, %8, %cst_9 [0] : vector<128x128xf32> to vector<128xf32>
    %10 = vector.shape_cast %9 : vector<128xf32> to vector<1x128xf32>
    %11 = vector.broadcast %10 : vector<1x128xf32> to vector<128x128xf32>
    %12 = arith.subf %8, %11 : vector<128x128xf32>
    %13 = math.exp %12 : vector<128x128xf32>
    %cst_10 = arith.constant dense<0.000000e+00> : vector<128xf32>
    %14 = vector.multi_reduction <add>, %13, %cst_10 [0] : vector<128x128xf32> to vector<128xf32>
    %15 = vector.shape_cast %14 : vector<128xf32> to vector<1x128xf32>
    %cst_11 = arith.constant dense<0.000000e+00> : vector<8x128xf32>
    %16 = tpu.matmul %7, %13, %cst_11 {dimension_numbers = #tpu.dot_dimension_numbers<[1], [0], [0], [1], [0, 0, 1, 1], [], []>} : vector<8x128xf32>, vector<128x128xf32>, vector<8x128xf32> -> vector<8x128xf32>
    %17 = tpu.reciprocal %15 : vector<1x128xf32> -> vector<1x128xf32>
    %18 = vector.broadcast %17 : vector<1x128xf32> to vector<8x128xf32>
    %19 = arith.mulf %16, %18 : vector<8x128xf32>
    %c0_12 = arith.constant 0 : index
    %c0_13 = arith.constant 0 : index
    %c0_14 = arith.constant 0 : index
    %20 = vector.load %arg6[%c0_12, %c0_13, %c0_14] : memref<1x8x128xf32, #tpu.memory_space<vmem>>, vector<1x8x128xf32>
    %21 = vector.shape_cast %20 : vector<1x8x128xf32> to vector<8x128xf32>
    %22 = vector.shape_cast %19 : vector<8x128xf32> to vector<1x8x128xf32>
    tpu.vector_store %arg6[%c0_12, %c0_13, %c0_14], %22 {strides = array<i32>} : memref<1x8x128xf32, #tpu.memory_space<vmem>>, vector<1x8x128xf32>,
    return
  }
  func.func @transform_0(%arg0: i32, %arg1: i32, %arg2: i32) -> (i32, i32, i32) {
    %c0_i32 = arith.constant 0 : i32
    return %arg0, %arg1, %arg2 : i32, i32, i32
  }
  func.func @transform_1(%arg0: i32, %arg1: i32, %arg2: i32) -> (i32, i32, i32) {
    %c4_i32 = arith.constant 4 : i32
    %0 = arith.addi %c4_i32, %arg1 : i32
    %c0_i32 = arith.constant 0 : i32
    %c0_i32_0 = arith.constant 0 : i32
    return %arg0, %0, %c0_i32 : i32, i32, i32
  }
  func.func @transform_2(%arg0: i32, %arg1: i32, %arg2: i32) -> (i32, i32, i32) {
    %c8_i32 = arith.constant 8 : i32
    %0 = arith.addi %c8_i32, %arg1 : i32
    %c0_i32 = arith.constant 0 : i32
    %c0_i32_0 = arith.constant 0 : i32
    return %arg0, %0, %c0_i32 : i32, i32, i32
  }
  func.func @transform_3(%arg0: i32, %arg1: i32, %arg2: i32) -> (i32, i32, i32) {
    %c0_i32 = arith.constant 0 : i32
    return %arg0, %arg1, %arg2 : i32, i32, i32
  }
}

</mosaic_0001>

<llo_original>
// kernel: tpu_custom_call.1
$region0: #{tpu_custom_call.1}
  #allocation0 [shape = 'u32[]', space=smem, size = 0x4, offset = 0x4, fixed_abs, tag = 'smem constant byte address 0x4 - core index']
  #allocation1 [shape = 'u32[144,128]{1,0:T(1,128)}', space=vmem, size = 0x12000, scoped, tag = 'internal scratch']
  %s0 = inlined_call_operand.hbm [shape: f32[2,96,128], index: 0, kind: input, shape index: {}]
  %s1 = inlined_call_operand.hbm [shape: f32[2,96,128], index: 1, kind: input, shape index: {}]
  %s2 = inlined_call_operand.hbm [shape: f32[2,96,128], index: 2, kind: input, shape index: {}]
  %s3 = inlined_call_operand.hbm [shape: f32[2,32,128], index: 3, kind: output, shape index: {}]
  %s4 = sld [smem:[#allocation0]]
  $region57: #{tpu_custom_call.1} parent=0
    _
  %s6 = ssub.s32 1, %s4
  %s7 = scalar_select 0, %s6, %s4
  $region1: #{tpu_custom_call.1} parent=0
    #allocation2 [shape = 'u8[8192]{0}', space=vmem, size = 0x2000, scoped, tag = 'input window, operand 0']
    #allocation3 [shape = 's32[2]{0}', space=sflag, size = 0x8, scoped, tag = 'scoped memory for tpu_custom_call.1']
    #allocation4 [shape = 's32[2]{0}', space=sflag, size = 0x8, scoped, tag = 'scoped memory for tpu_custom_call.1']
    #allocation5 [shape = 'u8[8192]{0}', space=vmem, size = 0x2000, scoped, tag = 'input window, operand 1']
    #allocation6 [shape = 's32[2]{0}', space=sflag, size = 0x8, scoped, tag = 'scoped memory for tpu_custom_call.1']
    #allocation7 [shape = 'u8[8192]{0}', space=vmem, size = 0x2000, scoped, tag = 'input window, operand 2']
    #allocation8 [shape = 'u8[8192]{0}', space=vmem, size = 0x2000, scoped, tag = 'output window, operand 0']
    %8 = vsyncpa [#allocation3], 0
    %s9 = scalar_lea.sflag [#allocation3], 1
    %10 = vsyncpa %s9, 0
    %11 = vsyncpa [#allocation6], 0
    %s12 = scalar_lea.sflag [#allocation6], 1
    %13 = vsyncpa %s12, 0
    %14 = vsyncpa [#allocation4], 0
    %s15 = scalar_lea.sflag [#allocation4], 1
    %16 = vsyncpa %s15, 0
    loop: start=0, step=1, limit=10
    $region2: #{tpu_custom_call.1} parent=1 // loop_pre_header
      _
    $region3: #{tpu_custom_call.1} parent=1 // loop_header
      %s18 = sphi 0, %s22
      %p19 = scmp.ge.s32.totalorder %s18, 10
      %s25 = sphi 0, %s44
      %s26 = sphi 0, %s40
      %s27 = sphi 0, %s36
      %s28 = sphi 0, %s25
      %s29 = sphi 0, %s26
      %s30 = sphi 0, %s27
      %s31 = sphi 0, %s28
      %s32 = sphi 0, %s29
      %s33 = sphi 0, %s30
      %s51 = sphi 0, %s53
      %s54 = sphi 0, %s51
      %s55 = sphi 0, %s54
      %s71 = sphi 0, %s55
      %s81 = sphi 0, %s83
      %s84 = sphi 0, %s81
      %s85 = sphi 0, %s84
      %s101 = sphi 0, %s85
      %s111 = sphi 0, %s113
      %s114 = sphi 0, %s111
      %s115 = sphi 0, %s114
      %s131 = sphi 0, %s115
      %s141 = sphi 0, %s143
      %s144 = sphi 0, %s141
      %s145 = sphi 0, %s144
      %s161 = sphi 0, %s145
    $region4: #{tpu_custom_call.1} parent=1 // loop_header_branch
      %21 = sbr.rel (%p19) target = $region8
    $region5: #{tpu_custom_call.1} parent=1 // loop_body
      %s23 = ssub.s32 %s18, 1
      %s24 = ssub.s32 %s18, 2
      %s34 = sadd.s32 1, %s27
      %p35 = scmp.ge.s32.totalorder %s34, 1
      %s36 = scalar_select %p35, 0, %s34
      %s37 = sadd.s32 1, %s26
      %s38 = scalar_select %p35, %s37, %s26
      %p39 = scmp.ge.s32.totalorder %s38, 4
      %s40 = scalar_select %p39, 0, %s38
      %s41 = sadd.s32 1, %s25
      %s42 = scalar_select %p39, %s41, %s25
      %p43 = scmp.ge.s32.totalorder %s42, 2
      %s44 = scalar_select %p43, 0, %s42
      %s45 = ssub.s32 %s25, %s44
      %s46 = ssub.s32 %s26, %s40
      %s47 = sor.u32 %s45, %s46
      %s48 = ssub.s32 %s27, %s36
      %s49 = sor.u32 %s47, %s48
      %p50 = scmp.eq.s32.totalorder %s49, 0
      %s52 = sadd.s32 %s51, 1
      %s53 = scalar_select %p50, %s51, %s52
      %p56 = pneg %p50
      %p57 = scmp.eq.s32.totalorder %s18, 7
      %p58 = por %p56, %p57
      %p59 = scmp.ne.s32.totalorder %s51, %s54
      %p60 = scmp.eq.s32.totalorder %s18, 0
      %p61 = por %p59, %p60
      %p62 = scmp.ne.s32.totalorder %s51, %s54
      %p63 = scmp.eq.s32.totalorder %s23, 7
      %p64 = por %p62, %p63
      %p65 = scmp.ne.s32.totalorder %s54, %s55
      %p66 = scmp.eq.s32.totalorder %s23, 0
      %p67 = por %p65, %p66
      %p68 = scmp.ne.s32.totalorder %s54, %s55
      %p69 = scmp.eq.s32.totalorder %s24, 7
      %p70 = por %p68, %p69
      %p72 = scmp.ne.s32.totalorder %s55, %s71
      %p73 = scmp.eq.s32.totalorder %s24, 0
      %p74 = por %p72, %p73
      %s75 = sadd.s32 %s26, 4
      %s76 = sadd.s32 %s40, 4
      %s77 = ssub.s32 %s25, %s44
      %s78 = ssub.s32 %s75, %s76
      %s79 = sor.u32 %s77, %s78
      %p80 = scmp.eq.s32.totalorder %s79, 0
      %s82 = sadd.s32 %s81, 1
      %s83 = scalar_select %p80, %s81, %s82
      %p86 = pneg %p80
      %p87 = scmp.eq.s32.totalorder %s18, 7
      %p88 = por %p86, %p87
      %p89 = scmp.ne.s32.totalorder %s81, %s84
      %p90 = scmp.eq.s32.totalorder %s18, 0
      %p91 = por %p89, %p90
      %p92 = scmp.ne.s32.totalorder %s81, %s84
      %p93 = scmp.eq.s32.totalorder %s23, 7
      %p94 = por %p92, %p93
      %p95 = scmp.ne.s32.totalorder %s84, %s85
      %p96 = scmp.eq.s32.totalorder %s23, 0
      %p97 = por %p95, %p96
      %p98 = scmp.ne.s32.totalorder %s84, %s85
      %p99 = scmp.eq.s32.totalorder %s24, 7
      %p100 = por %p98, %p99
      %p102 = scmp.ne.s32.totalorder %s85, %s101
      %p103 = scmp.eq.s32.totalorder %s24, 0
      %p104 = por %p102, %p103
      %s105 = sadd.s32 %s26, 8
      %s106 = sadd.s32 %s40, 8
      %s107 = ssub.s32 %s25, %s44
      %s108 = ssub.s32 %s105, %s106
      %s109 = sor.u32 %s107, %s108
      %p110 = scmp.eq.s32.totalorder %s109, 0
      %s112 = sadd.s32 %s111, 1
      %s113 = scalar_select %p110, %s111, %s112
      %p116 = pneg %p110
      %p117 = scmp.eq.s32.totalorder %s18, 7
      %p118 = por %p116, %p117
      %p119 = scmp.ne.s32.totalorder %s111, %s114
      %p120 = scmp.eq.s32.totalorder %s18, 0
      %p121 = por %p119, %p120
      %p122 = scmp.ne.s32.totalorder %s111, %s114
      %p123 = scmp.eq.s32.totalorder %s23, 7
      %p124 = por %p122, %p123
      %p125 = scmp.ne.s32.totalorder %s114, %s115
      %p126 = scmp.eq.s32.totalorder %s23, 0
      %p127 = por %p125, %p126
      %p128 = scmp.ne.s32.totalorder %s114, %s115
      %p129 = scmp.eq.s32.totalorder %s24, 7
      %p130 = por %p128, %p129
      %p132 = scmp.ne.s32.totalorder %s115, %s131
      %p133 = scmp.eq.s32.totalorder %s24, 0
      %p134 = por %p132, %p133
      %s135 = ssub.s32 %s25, %s44
      %s136 = ssub.s32 %s26, %s40
      %s137 = sor.u32 %s135, %s136
      %s138 = ssub.s32 %s27, %s36
      %s139 = sor.u32 %s137, %s138
      %p140 = scmp.eq.s32.totalorder %s139, 0
      %s142 = sadd.s32 %s141, 1
      %s143 = scalar_select %p140, %s141, %s142
      %p146 = pneg %p140
      %p147 = scmp.eq.s32.totalorder %s18, 7
      %p148 = por %p146, %p147
      %p149 = scmp.ne.s32.totalorder %s141, %s144
      %p150 = scmp.eq.s32.totalorder %s18, 0
      %p151 = por %p149, %p150
      %p152 = scmp.ne.s32.totalorder %s141, %s144
      %p153 = scmp.eq.s32.totalorder %s23, 7
      %p154 = por %p152, %p153
      %p155 = scmp.ne.s32.totalorder %s144, %s145
      %p156 = scmp.eq.s32.totalorder %s23, 0
      %p157 = por %p155, %p156
      %p158 = scmp.ne.s32.totalorder %s144, %s145
      %p159 = scmp.eq.s32.totalorder %s24, 7
      %p160 = por %p158, %p159
      %p162 = scmp.ne.s32.totalorder %s145, %s161
      %p163 = scmp.eq.s32.totalorder %s24, 0
      %p164 = por %p162, %p163
      %p165 = scmp.le.s32.totalorder 1, %s18
      %p166 = scmp.lt.s32.totalorder %s18, 9
      %p167 = pnand %p165, %p166
      %p168 = pneg %p167
      // Predicated region
      $region9: #{tpu_custom_call.1} parent=5 // pred_check
        _
      $region10: #{tpu_custom_call.1} parent=5 // pred_check_branch
        %170 = sbr.rel (%p167) target = $region12
      $region11: #{tpu_custom_call.1} parent=5 // pred_region
        %s171 = ssub.s32 %s18, 1
      $region12: #{tpu_custom_call.1} parent=5 // pred_fallthru
        _
      %p172 = scmp.lt.s32.totalorder %s18, 8
      // Predicated region
      $region13: #{tpu_custom_call.1} parent=5 // pred_check
        %p173 = pneg %p172
      $region14: #{tpu_custom_call.1} parent=5 // pred_check_branch
        %175 = sbr.rel (%p173) target = $region16
      $region15: #{tpu_custom_call.1} parent=5 // pred_region
        // Predicated region
        $region17: #{tpu_custom_call.1} parent=15 // pred_check
          %p176 = pneg %p61
        $region18: #{tpu_custom_call.1} parent=15 // pred_check_branch
          %178 = sbr.rel (%p176) target = $region20
        $region19: #{tpu_custom_call.1} parent=15 // pred_region
          %s179 = sand.u32 %s51, 1
          %s180 = scalar_lea.sflag [#allocation3], %s179
          %s181 = sand.u32 %s51, 1
          %s182 = smul.addr %s181, 8
          %s183 = scalar_lea.vmem [#allocation2], %s182
          %s185 = ssub.s32 128, 128
          %186 = vsyncadd %s180, %s185
          %s187 = sadd.s32 %s27, %s26
          %s188 = smul.addr %s25, 12
          %s189 = sadd.s32 %s187, %s188
          %s190 = smul.addr %s189, 128
          %s191 = scalar_lea.hbm %s0, %s190
          %s193 = sshll.u32 %s183, 4
          %s194 = int_to_ptr.vmem [resolvable:$true] %s193
          %196 = dma.hbm_to_vmem [thread:$0]  %s191, 128, %s194, %s180
        $region20: #{tpu_custom_call.1} parent=15 // pred_fallthru
          _
        // Predicated region
        $region21: #{tpu_custom_call.1} parent=15 // pred_check
          %p197 = pneg %p91
        $region22: #{tpu_custom_call.1} parent=15 // pred_check_branch
          %199 = sbr.rel (%p197) target = $region24
        $region23: #{tpu_custom_call.1} parent=15 // pred_region
          %s200 = sand.u32 %s18, 1
          %s201 = scalar_lea.sflag [#allocation6], %s200
          %s202 = sand.u32 %s81, 1
          %s203 = smul.addr %s202, 8
          %s204 = scalar_lea.vmem [#allocation5], %s203
          %s205 = sadd.s32 %s26, 4
          %s207 = ssub.s32 128, 128
          %208 = vsyncadd %s201, %s207
          %s209 = smul.addr %s25, 12
          %s210 = sadd.s32 %s205, %s209
          %s211 = smul.addr %s210, 128
          %s212 = scalar_lea.hbm %s1, %s211
          %s214 = sshll.u32 %s204, 4
          %s215 = int_to_ptr.vmem [resolvable:$true] %s214
          %217 = dma.hbm_to_vmem [thread:$0]  %s212, 128, %s215, %s201
        $region24: #{tpu_custom_call.1} parent=15 // pred_fallthru
          _
        // Predicated region
        $region25: #{tpu_custom_call.1} parent=15 // pred_check
          %p218 = pneg %p121
        $region26: #{tpu_custom_call.1} parent=15 // pred_check_branch
          %220 = sbr.rel (%p218) target = $region28
        $region27: #{tpu_custom_call.1} parent=15 // pred_region
          %s221 = sand.u32 %s18, 1
          %s222 = scalar_lea.sflag [#allocation6], %s221
          %s223 = sand.u32 %s111, 1
          %s224 = smul.addr %s223, 8
          %s225 = scalar_lea.vmem [#allocation7], %s224
          %s226 = sadd.s32 %s26, 8
          %s228 = ssub.s32 128, 128
          %229 = vsyncadd %s222, %s228
          %s230 = smul.addr %s25, 12
          %s231 = sadd.s32 %s226, %s230
          %s232 = smul.addr %s231, 128
          %s233 = scalar_lea.hbm %s2, %s232
          %s235 = sshll.u32 %s225, 4
          %s236 = int_to_ptr.vmem [resolvable:$true] %s235
          %238 = dma.hbm_to_vmem [thread:$0]  %s233, 128, %s236, %s222
        $region28: #{tpu_custom_call.1} parent=15 // pred_fallthru
          _
      $region16: #{tpu_custom_call.1} parent=5 // pred_fallthru
        _
      %p239 = scmp.le.s32.totalorder 1, %s18
      %p240 = scmp.lt.s32.totalorder %s18, 9
      %p241 = pnand %p239, %p240
      %p242 = pneg %p241
      // Predicated region
      $region29: #{tpu_custom_call.1} parent=5 // pred_check
        _
      $region30: #{tpu_custom_call.1} parent=5 // pred_check_branch
        %244 = sbr.rel (%p241) target = $region32
      $region31: #{tpu_custom_call.1} parent=5 // pred_region
        %s245 = ssub.s32 %s18, 1
        %s246 = sand.u32 %s54, 1
        %s247 = scalar_lea.sflag [#allocation3], %s246
        %s248 = sand.u32 %s54, 1
        %s249 = smul.addr %s248, 8
        %s250 = scalar_lea.vmem [#allocation2], %s249
        // Predicated region
        $region33: #{tpu_custom_call.1} parent=31 // pred_check
          %p251 = pneg %p67
        $region34: #{tpu_custom_call.1} parent=31 // pred_check_branch
          %253 = sbr.rel (%p251) target = $region36
        $region35: #{tpu_custom_call.1} parent=31 // pred_region
          %254 = dma.done %s247, 128
        $region36: #{tpu_custom_call.1} parent=31 // pred_fallthru
          _
        %s255 = sand.u32 %s23, 1
        %s256 = scalar_lea.sflag [#allocation6], %s255
        %s257 = sand.u32 %s84, 1
        %s258 = smul.addr %s257, 8
        %s259 = scalar_lea.vmem [#allocation5], %s258
        // Predicated region
        $region37: #{tpu_custom_call.1} parent=31 // pred_check
          %p260 = pneg %p97
        $region38: #{tpu_custom_call.1} parent=31 // pred_check_branch
          %262 = sbr.rel (%p260) target = $region40
        $region39: #{tpu_custom_call.1} parent=31 // pred_region
          %263 = dma.done %s256, 128
        $region40: #{tpu_custom_call.1} parent=31 // pred_fallthru
          _
        %s264 = sand.u32 %s23, 1
        %s265 = scalar_lea.sflag [#allocation6], %s264
        %s266 = sand.u32 %s114, 1
        %s267 = smul.addr %s266, 8
        %s268 = scalar_lea.vmem [#allocation7], %s267
        // Predicated region
        $region41: #{tpu_custom_call.1} parent=31 // pred_check
          %p269 = pneg %p127
        $region42: #{tpu_custom_call.1} parent=31 // pred_check_branch
          %271 = sbr.rel (%p269) target = $region44
        $region43: #{tpu_custom_call.1} parent=31 // pred_region
          %272 = dma.done %s265, 128
        $region44: #{tpu_custom_call.1} parent=31 // pred_fallthru
          _
        %s273 = sand.u32 %s54, 1
        %s274 = scalar_lea.sflag [#allocation3], %s273
        %s275 = sand.u32 %s54, 1
        %s276 = smul.addr %s275, 8
        %s277 = scalar_lea.vmem [#allocation2], %s276
        %p278 = pneg %p67
        %p279 = pneg %p64
        %s280 = sand.u32 %s23, 1
        %s281 = scalar_lea.sflag [#allocation6], %s280
        %s282 = sand.u32 %s84, 1
        %s283 = smul.addr %s282, 8
        %s284 = scalar_lea.vmem [#allocation5], %s283
        %p285 = pneg %p97
        %p286 = pneg %p94
        %s287 = sand.u32 %s23, 1
        %s288 = scalar_lea.sflag [#allocation6], %s287
        %s289 = sand.u32 %s114, 1
        %s290 = smul.addr %s289, 8
        %s291 = scalar_lea.vmem [#allocation7], %s290
        %p292 = pneg %p127
        %p293 = pneg %p124
        %p294 = pneg %p157
        %p295 = pneg %p154
        %s296 = sand.u32 %s144, 1
        %s297 = scalar_lea.sflag [#allocation4], %s296
        %s298 = sand.u32 %s144, 1
        %s299 = smul.addr %s298, 8
        %s300 = scalar_lea.vmem [#allocation8], %s299
        %s301 = sadd.s32 %s29, 4
        %s302 = sadd.s32 %s29, 8
        %v303 = vld [vmem:[%s250] sm:$0xff]
        %v304 = vmul.f32 %v303, 0.35355338
        %v305 = vld [vmem:[%s259] sm:$0xff]
        %v306 = vld [vmem:[%s268] sm:$0xff]
        %307 = vxpose.xlu0.b32.start [1/16] %v305, 128
        %308 = vxpose.xlu0.b32.cont [2/16] 0.0, 128
        %309 = vxpose.xlu0.b32.cont [3/16] 0.0, 128
        %310 = vxpose.xlu0.b32.cont [4/16] 0.0, 128
        %311 = vxpose.xlu0.b32.cont [5/16] 0.0, 128
        %312 = vxpose.xlu0.b32.cont [6/16] 0.0, 128
        %313 = vxpose.xlu0.b32.cont [7/16] 0.0, 128
        %314 = vxpose.xlu0.b32.cont [8/16] 0.0, 128
        %315 = vxpose.xlu0.b32.cont [9/16] 0.0, 128
        %316 = vxpose.xlu0.b32.cont [10/16] 0.0, 128
        %317 = vxpose.xlu0.b32.cont [11/16] 0.0, 128
        %318 = vxpose.xlu0.b32.cont [12/16] 0.0, 128
        %319 = vxpose.xlu0.b32.cont [13/16] 0.0, 128
        %320 = vxpose.xlu0.b32.cont [14/16] 0.0, 128
        %321 = vxpose.xlu0.b32.cont [15/16] 0.0, 128
        %322 = vxpose.xlu0.b32.end [16/16] 0.0, 128
        %v323 = vpop.trf.xlu0
        %v324 = vpop.trf.xlu0
        %v325 = vpop.trf.xlu0
        %v326 = vpop.trf.xlu0
        %v327 = vpop.trf.xlu0
        %v328 = vpop.trf.xlu0
        %v329 = vpop.trf.xlu0
        %v330 = vpop.trf.xlu0
        %v331 = vpop.trf.xlu0
        %v332 = vpop.trf.xlu0
        %v333 = vpop.trf.xlu0
        %v334 = vpop.trf.xlu0
        %v335 = vpop.trf.xlu0
        %v336 = vpop.trf.xlu0
        %v337 = vpop.trf.xlu0
        %v338 = vpop.trf.xlu0
        %vm339 = vcmask 64512
        %v341 = vsel %vm339, %v323, 0
        %v344 = vsel %vm339, %v324, 0
        %v347 = vsel %vm339, %v325, 0
        %v350 = vsel %vm339, %v326, 0
        %v353 = vsel %vm339, %v327, 0
        %v356 = vsel %vm339, %v328, 0
        %v359 = vsel %vm339, %v329, 0
        %v362 = vsel %vm339, %v330, 0
        %v365 = vsel %vm339, %v331, 0
        %v368 = vsel %vm339, %v332, 0
        %v371 = vsel %vm339, %v333, 0
        %v374 = vsel %vm339, %v334, 0
        %v377 = vsel %vm339, %v335, 0
        %v380 = vsel %vm339, %v336, 0
        %v383 = vsel %vm339, %v337, 0
        %v386 = vsel %vm339, %v338, 0
        %388 = vmatprep.subr.mxu0 0.0
        %389 = vmatpush1.msra.mxu0 0.0
        %390 = vmatprep.subr.mxu0 0.0
        %391 = vmatpush1.msra.mxu0 0.0
        %392 = vmatprep.subr.mxu0 0.0
        %393 = vmatpush1.msra.mxu0 0.0
        %394 = vmatprep.subr.mxu0 0.0
        %395 = vmatpush1.msra.mxu0 0.0
        %396 = vmatprep.subr.mxu0 0.0
        %397 = vmatpush1.msra.mxu0 0.0
        %398 = vmatprep.subr.mxu0 0.0
        %399 = vmatpush1.msra.mxu0 0.0
        %400 = vmatprep.subr.mxu0 0.0
        %401 = vmatpush1.msra.mxu0 0.0
        %402 = vmatprep.subr.mxu0 0.0
        %403 = vmatpush1.msra.mxu0 0.0
        %404 = vmatprep.subr.mxu0 0.0
        %405 = vmatpush1.msra.mxu0 0.0
        %406 = vmatprep.subr.mxu0 0.0
        %407 = vmatpush1.msra.mxu0 0.0
        %408 = vmatprep.subr.mxu0 0.0
        %409 = vmatpush1.msra.mxu0 0.0
        %410 = vmatprep.subr.mxu0 0.0
        %411 = vmatpush1.msra.mxu0 0.0
        %412 = vmatprep.subr.mxu0 0.0
        %413 = vmatpush1.msra.mxu0 0.0
        %414 = vmatprep.subr.mxu0 0.0
        %415 = vmatpush1.msra.mxu0 0.0
        %416 = vmatprep.subr.mxu0 0.0
        %417 = vmatpush1.msra.mxu0 0.0
        %418 = vmatprep.subr.mxu0 0.0
        %419 = vmatpush1.msra.mxu0 %v304
        %420 = vmatprep.subr.mxu0 0.0
        %421 = vmatpush2.msra.mxu0 0.0
        %422 = vmatprep.subr.mxu0 0.0
        %423 = vmatpush2.msra.mxu0 0.0
        %424 = vmatprep.subr.mxu0 0.0
        %425 = vmatpush2.msra.mxu0 0.0
        %426 = vmatprep.subr.mxu0 0.0
        %427 = vmatpush2.msra.mxu0 0.0
        %428 = vmatprep.subr.mxu0 0.0
        %429 = vmatpush2.msra.mxu0 0.0
        %430 = vmatprep.subr.mxu0 0.0
        %431 = vmatpush2.msra.mxu0 0.0
        %432 = vmatprep.subr.mxu0 0.0
        %433 = vmatpush2.msra.mxu0 0.0
        %434 = vmatprep.subr.mxu0 0.0
        %435 = vmatpush2.msra.mxu0 0.0
        %436 = vmatprep.subr.mxu0 0.0
        %437 = vmatpush2.msra.mxu0 0.0
        %438 = vmatprep.subr.mxu0 0.0
        %439 = vmatpush2.msra.mxu0 0.0
        %440 = vmatprep.subr.mxu0 0.0
        %441 = vmatpush2.msra.mxu0 0.0
        %442 = vmatprep.subr.mxu0 0.0
        %443 = vmatpush2.msra.mxu0 0.0
        %444 = vmatprep.subr.mxu0 0.0
        %445 = vmatpush2.msra.mxu0 0.0
        %446 = vmatprep.subr.mxu0 0.0
        %447 = vmatpush2.msra.mxu0 0.0
        %448 = vmatprep.subr.mxu0 0.0
        %449 = vmatpush2.msra.mxu0 0.0
        %450 = vmatprep.subr.mxu0 0.0
        %451 = vmatpush2.msra.mxu0 0.0
        %452 = vmatprep.mubr.f32.mxu0 0.0
        %453 = vmatmul.mubr.f32.gmra.mxu0 %v341
        %v454 = vpop.f32.mrf.mxu0
        %v455 = vadd.f32 0.0, %v454
        %v456 = vpop.f32.mrf.mxu0
        %457 = vmatprep.mubr.f32.mxu0 0.0
        %458 = vmatmul.mubr.f32.gmra.mxu0 %v344
        %v459 = vpop.f32.mrf.mxu0
        %v460 = vadd.f32 0.0, %v459
        %v461 = vpop.f32.mrf.mxu0
        %462 = vmatprep.mubr.f32.mxu0 0.0
        %463 = vmatmul.mubr.f32.gmra.mxu0 %v347
        %v464 = vpop.f32.mrf.mxu0
        %v465 = vadd.f32 0.0, %v464
        %v466 = vpop.f32.mrf.mxu0
        %467 = vmatprep.mubr.f32.mxu0 0.0
        %468 = vmatmul.mubr.f32.gmra.mxu0 %v350
        %v469 = vpop.f32.mrf.mxu0
        %v470 = vadd.f32 0.0, %v469
        %v471 = vpop.f32.mrf.mxu0
        %472 = vmatprep.mubr.f32.mxu0 0.0
        %473 = vmatmul.mubr.f32.gmra.mxu0 %v353
        %v474 = vpop.f32.mrf.mxu0
        %v475 = vadd.f32 0.0, %v474
        %v476 = vpop.f32.mrf.mxu0
        %477 = vmatprep.mubr.f32.mxu0 0.0
        %478 = vmatmul.mubr.f32.gmra.mxu0 %v356
        %v479 = vpop.f32.mrf.mxu0
        %v480 = vadd.f32 0.0, %v479
        %v481 = vpop.f32.mrf.mxu0
        %482 = vmatprep.mubr.f32.mxu0 0.0
        %483 = vmatmul.mubr.f32.gmra.mxu0 %v359
        %v484 = vpop.f32.mrf.mxu0
        %v485 = vadd.f32 0.0, %v484
        %v486 = vpop.f32.mrf.mxu0
        %487 = vmatprep.mubr.f32.mxu0 0.0
        %488 = vmatmul.mubr.f32.gmra.mxu0 %v362
        %v489 = vpop.f32.mrf.mxu0
        %v490 = vadd.f32 0.0, %v489
        %v491 = vpop.f32.mrf.mxu0
        %492 = vmatprep.mubr.f32.mxu0 0.0
        %493 = vmatmul.mubr.f32.gmra.mxu0 %v365
        %v494 = vpop.f32.mrf.mxu0
        %v495 = vadd.f32 0.0, %v494
        %v496 = vpop.f32.mrf.mxu0
        %497 = vmatprep.mubr.f32.mxu0 0.0
        %498 = vmatmul.mubr.f32.gmra.mxu0 %v368
        %v499 = vpop.f32.mrf.mxu0
        %v500 = vadd.f32 0.0, %v499
        %v501 = vpop.f32.mrf.mxu0
        %502 = vmatprep.mubr.f32.mxu0 0.0
        %503 = vmatmul.mubr.f32.gmra.mxu0 %v371
        %v504 = vpop.f32.mrf.mxu0
        %v505 = vadd.f32 0.0, %v504
        %v506 = vpop.f32.mrf.mxu0
        %507 = vmatprep.mubr.f32.mxu0 0.0
        %508 = vmatmul.mubr.f32.gmra.mxu0 %v374
        %v509 = vpop.f32.mrf.mxu0
        %v510 = vadd.f32 0.0, %v509
        %v511 = vpop.f32.mrf.mxu0
        %512 = vmatprep.mubr.f32.mxu0 0.0
        %513 = vmatmul.mubr.f32.gmra.mxu0 %v377
        %v514 = vpop.f32.mrf.mxu0
        %v515 = vadd.f32 0.0, %v514
        %v516 = vpop.f32.mrf.mxu0
        %517 = vmatprep.mubr.f32.mxu0 0.0
        %518 = vmatmul.mubr.f32.gmra.mxu0 %v380
        %v519 = vpop.f32.mrf.mxu0
        %v520 = vadd.f32 0.0, %v519
        %v521 = vpop.f32.mrf.mxu0
        %522 = vmatprep.mubr.f32.mxu0 0.0
        %523 = vmatmul.mubr.f32.gmra.mxu0 %v383
        %v524 = vpop.f32.mrf.mxu0
        %v525 = vadd.f32 0.0, %v524
        %v526 = vpop.f32.mrf.mxu0
        %527 = vmatprep.mubr.f32.mxu0 0.0
        %528 = vmatmul.mubr.f32.gmra.mxu0 %v386
        %v529 = vpop.f32.mrf.mxu0
        %v530 = vadd.f32 0.0, %v529
        %v531 = vpop.f32.mrf.mxu0
        %532 = vdwg.mxu0
        %v533 = vmax.f32 %v455, %v475
        %v534 = vmax.f32 %v460, %v480
        %v535 = vmax.f32 %v465, %v485
        %v536 = vmax.f32 %v470, %v490
        %v537 = vmax.f32 %v533, %v495
        %v538 = vmax.f32 %v534, %v500
        %v539 = vmax.f32 %v535, %v505
        %v540 = vmax.f32 %v536, %v510
        %v541 = vmax.f32 %v537, %v515
        %v542 = vmax.f32 %v538, %v520
        %v543 = vmax.f32 %v539, %v525
        %v544 = vmax.f32 %v540, %v530
        %v545 = vmax.f32 %v541, %v542
        %v546 = vmax.f32 %v543, %v544
        %v547 = vmax.f32 %v545, %v546
        %v548 = vrot.slane %v547, 4
        %v549 = vmax.f32 %v547, %v548
        %v550 = vrot.slane %v549, 2
        %v551 = vmax.f32 %v549, %v550
        %v552 = vrot.slane %v551, 1
        %v553 = vmax.f32 %v551, %v552
        %v554 = vsub.f32 %v455, %v553
        %v555 = vsub.f32 %v460, %v553
        %v556 = vsub.f32 %v465, %v553
        %v557 = vsub.f32 %v470, %v553
        %v558 = vsub.f32 %v475, %v553
        %v559 = vsub.f32 %v480, %v553
        %v560 = vsub.f32 %v485, %v553
        %v561 = vsub.f32 %v490, %v553
        %v562 = vsub.f32 %v495, %v553
        %v563 = vsub.f32 %v500, %v553
        %v564 = vsub.f32 %v505, %v553
        %v565 = vsub.f32 %v510, %v553
        %v566 = vsub.f32 %v515, %v553
        %v567 = vsub.f32 %v520, %v553
        %v568 = vsub.f32 %v525, %v553
        %v569 = vsub.f32 %v530, %v553
        %v570 = vmul.f32 %v554, 1.442695
        %v571 = vpow.pop %v570
        %v572 = vmul.f32 %v555, 1.442695
        %v573 = vpow.pop %v572
        %v574 = vmul.f32 %v556, 1.442695
        %v575 = vpow.pop %v574
        %v576 = vmul.f32 %v557, 1.442695
        %v577 = vpow.pop %v576
        %v578 = vmul.f32 %v558, 1.442695
        %v579 = vpow.pop %v578
        %v580 = vmul.f32 %v559, 1.442695
        %v581 = vpow.pop %v580
        %v582 = vmul.f32 %v560, 1.442695
        %v583 = vpow.pop %v582
        %v584 = vmul.f32 %v561, 1.442695
        %v585 = vpow.pop %v584
        %v586 = vmul.f32 %v562, 1.442695
        %v587 = vpow.pop %v586
        %v588 = vmul.f32 %v563, 1.442695
        %v589 = vpow.pop %v588
        %v590 = vmul.f32 %v564, 1.442695
        %v591 = vpow.pop %v590
        %v592 = vmul.f32 %v565, 1.442695
        %v593 = vpow.pop %v592
        %v594 = vmul.f32 %v566, 1.442695
        %v595 = vpow.pop %v594
        %v596 = vmul.f32 %v567, 1.442695
        %v597 = vpow.pop %v596
        %v598 = vmul.f32 %v568, 1.442695
        %v599 = vpow.pop %v598
        %v600 = vmul.f32 %v569, 1.442695
        %v601 = vpow.pop %v600
        %v602 = vadd.f32 %v571, %v573
        %v603 = vadd.f32 %v602, %v575
        %v604 = vadd.f32 %v603, %v577
        %v605 = vadd.f32 %v604, %v579
        %v606 = vadd.f32 %v605, %v581
        %v607 = vadd.f32 %v606, %v583
        %v608 = vadd.f32 %v607, %v585
        %v609 = vadd.f32 %v608, %v587
        %v610 = vadd.f32 %v609, %v589
        %v611 = vadd.f32 %v610, %v591
        %v612 = vadd.f32 %v611, %v593
        %v613 = vadd.f32 %v612, %v595
        %v614 = vadd.f32 %v613, %v597
        %v615 = vadd.f32 %v614, %v599
        %v616 = vadd.f32 %v615, %v601
        %v617 = vrot.slane %v616, 4
        %v618 = vadd.f32 %v616, %v617
        %v619 = vrot.slane %v618, 2
        %v620 = vadd.f32 %v618, %v619
        %v621 = vrot.slane %v620, 1
        %v622 = vadd.f32 %v620, %v621
        %623 = vmatprep.subr.mxu0 0.0
        %624 = vmatpush1.msra.mxu0 %v601
        %625 = vmatprep.subr.mxu0 0.0
        %626 = vmatpush1.msra.mxu0 %v599
        %627 = vmatprep.subr.mxu0 0.0
        %628 = vmatpush1.msra.mxu0 %v597
        %629 = vmatprep.subr.mxu0 0.0
        %630 = vmatpush1.msra.mxu0 %v595
        %631 = vmatprep.subr.mxu0 0.0
        %632 = vmatpush1.msra.mxu0 %v593
        %633 = vmatprep.subr.mxu0 0.0
        %634 = vmatpush1.msra.mxu0 %v591
        %635 = vmatprep.subr.mxu0 0.0
        %636 = vmatpush1.msra.mxu0 %v589
        %637 = vmatprep.subr.mxu0 0.0
        %638 = vmatpush1.msra.mxu0 %v587
        %639 = vmatprep.subr.mxu0 0.0
        %640 = vmatpush1.msra.mxu0 %v585
        %641 = vmatprep.subr.mxu0 0.0
        %642 = vmatpush1.msra.mxu0 %v583
        %643 = vmatprep.subr.mxu0 0.0
        %644 = vmatpush1.msra.mxu0 %v581
        %645 = vmatprep.subr.mxu0 0.0
        %646 = vmatpush1.msra.mxu0 %v579
        %647 = vmatprep.subr.mxu0 0.0
        %648 = vmatpush1.msra.mxu0 %v577
        %649 = vmatprep.subr.mxu0 0.0
        %650 = vmatpush1.msra.mxu0 %v575
        %651 = vmatprep.subr.mxu0 0.0
        %652 = vmatpush1.msra.mxu0 %v573
        %653 = vmatprep.subr.mxu0 0.0
        %654 = vmatpush1.msra.mxu0 %v571
        %655 = vmatprep.subr.mxu0 0.0
        %656 = vmatpush2.msra.mxu0 0.0
        %657 = vmatprep.subr.mxu0 0.0
        %658 = vmatpush2.msra.mxu0 0.0
        %659 = vmatprep.subr.mxu0 0.0
        %660 = vmatpush2.msra.mxu0 0.0
        %661 = vmatprep.subr.mxu0 0.0
        %662 = vmatpush2.msra.mxu0 0.0
        %663 = vmatprep.subr.mxu0 0.0
        %664 = vmatpush2.msra.mxu0 0.0
        %665 = vmatprep.subr.mxu0 0.0
        %666 = vmatpush2.msra.mxu0 0.0
        %667 = vmatprep.subr.mxu0 0.0
        %668 = vmatpush2.msra.mxu0 0.0
        %669 = vmatprep.subr.mxu0 0.0
        %670 = vmatpush2.msra.mxu0 0.0
        %671 = vmatprep.subr.mxu0 0.0
        %672 = vmatpush2.msra.mxu0 0.0
        %673 = vmatprep.subr.mxu0 0.0
        %674 = vmatpush2.msra.mxu0 0.0
        %675 = vmatprep.subr.mxu0 0.0
        %676 = vmatpush2.msra.mxu0 0.0
        %677 = vmatprep.subr.mxu0 0.0
        %678 = vmatpush2.msra.mxu0 0.0
        %679 = vmatprep.subr.mxu0 0.0
        %680 = vmatpush2.msra.mxu0 0.0
        %681 = vmatprep.subr.mxu0 0.0
        %682 = vmatpush2.msra.mxu0 0.0
        %683 = vmatprep.subr.mxu0 0.0
        %684 = vmatpush2.msra.mxu0 0.0
        %685 = vmatprep.subr.mxu0 0.0
        %686 = vmatpush2.msra.mxu0 0.0
        %687 = vmatprep.mubr.f32.mxu0 0.0
        %688 = vmatmul.mubr.f32.gmra.mxu0 %v306
        %v689 = vpop.f32.mrf.mxu0
        %v690 = vadd.f32 0.0, %v689
        %v691 = vpop.f32.mrf.mxu0
        %692 = vdwg.mxu0
        %v693 = vrcp.pop %v622
        %v694 = vmul.f32 %v690, %v693
        %695 = vst [vmem:[%s300] sm:$0xff] %v694
        %s696 = sand.u32 %s144, 1
        %s697 = scalar_lea.sflag [#allocation4], %s696
        %s698 = sand.u32 %s144, 1
        %s699 = smul.addr %s698, 8
        %s700 = scalar_lea.vmem [#allocation8], %s699
        // Predicated region
        $region45: #{tpu_custom_call.1} parent=31 // pred_check
          %p701 = pneg %p154
        $region46: #{tpu_custom_call.1} parent=31 // pred_check_branch
          %703 = sbr.rel (%p701) target = $region48
        $region47: #{tpu_custom_call.1} parent=31 // pred_region
          %s705 = ssub.s32 128, 128
          %706 = vsyncadd %s697, %s705
          %s707 = sadd.s32 %s30, %s29
          %s708 = smul.addr %s28, 4
          %s709 = sadd.s32 %s707, %s708
          %s710 = smul.addr %s709, 128
          %s711 = scalar_lea.hbm %s3, %s710
          %s713 = sshll.u32 %s700, 4
          %s714 = int_to_ptr.vmem [resolvable:$true] %s713
          %716 = dma.vmem_to_hbm [thread:$0]  %s714, 128, %s711, %s697
        $region48: #{tpu_custom_call.1} parent=31 // pred_fallthru
          _
      $region32: #{tpu_custom_call.1} parent=5 // pred_fallthru
        _
      %p717 = scmp.le.s32.totalorder 2, %s18
      // Predicated region
      $region49: #{tpu_custom_call.1} parent=5 // pred_check
        %p718 = pneg %p717
      $region50: #{tpu_custom_call.1} parent=5 // pred_check_branch
        %720 = sbr.rel (%p718) target = $region52
      $region51: #{tpu_custom_call.1} parent=5 // pred_region
        %s721 = ssub.s32 %s18, 2
        // Predicated region
        $region53: #{tpu_custom_call.1} parent=51 // pred_check
          %p722 = pneg %p160
        $region54: #{tpu_custom_call.1} parent=51 // pred_check_branch
          %724 = sbr.rel (%p722) target = $region56
        $region55: #{tpu_custom_call.1} parent=51 // pred_region
          %s725 = sand.u32 %s145, 1
          %s726 = scalar_lea.sflag [#allocation4], %s725
          %s727 = sand.u32 %s145, 1
          %s728 = smul.addr %s727, 8
          %s729 = scalar_lea.vmem [#allocation8], %s728
          %730 = dma.done %s726, 128
        $region56: #{tpu_custom_call.1} parent=51 // pred_fallthru
          _
      $region52: #{tpu_custom_call.1} parent=5 // pred_fallthru
        _
    $region6: #{tpu_custom_call.1} parent=1 // loop_footer
      %s22 = sadd.s32 1, %s18
    $region7: #{tpu_custom_call.1} parent=1 // loop_footer_branch
      %17 = sbr.rel target = $region3
    $region8: #{tpu_custom_call.1} parent=1 // loop_exit
      _
    %731 = vsyncpa [#allocation3], 1
    %s732 = scalar_lea.sflag [#allocation3], 1
    %733 = vsyncpa %s732, 1
    %734 = vsyncpa [#allocation6], 1
    %s735 = scalar_lea.sflag [#allocation6], 1
    %736 = vsyncpa %s735, 1
    %737 = vsyncpa [#allocation4], 1
    %s738 = scalar_lea.sflag [#allocation4], 1
    %739 = vsyncpa %s738, 1

</llo_original>
